<compile_context>
chip_gen: v5e
topology: v5e:2x2
jax: 0.10.0
libtpu: 0.0.40
codegen_flags: <defaults>
</compile_context>

<pallas_src>
import functools

import jax
import jax.numpy as jnp
from jax import lax
from jax.experimental import pallas as pl
from jax.experimental.pallas import tpu as pltpu


# ----------------------------------------------------------------------------
# Generic tiled matmul + bias kernel (used for the hoisted layer-0 input
# projection and for the output projection).
# ----------------------------------------------------------------------------
def _matmul_bias_kernel(x_ref, w_ref, b_ref, o_ref):
    o_ref[...] = (jnp.dot(x_ref[...], w_ref[...],
                          preferred_element_type=jnp.float32)
                  + b_ref[...]).astype(o_ref.dtype)


def _pick_tile(dim, pref, align):
    """Largest tile <= pref that divides dim and is a multiple of align.
    Falls back to the full dim (always legal for a BlockSpec)."""
    if dim % align != 0 or dim <= pref:
        return dim
    t = (pref // align) * align
    while t > align and dim % t != 0:
        t -= align
    return t


def matmul_bias(x, w, b, *, tm_pref=256, tn_pref=512):
    """y = x @ w + b. x:(M,K) w:(K,N) b:(1,N); 'parallel' 2-D grid, K kept whole."""
    M, K = x.shape
    Kw, N = w.shape
    assert K == Kw and b.shape == (1, N)
    tm = _pick_tile(M, tm_pref, 8)
    tn = _pick_tile(N, tn_pref, 128)
    grid = (M // tm, N // tn)
    return pl.pallas_call(
        _matmul_bias_kernel,
        out_shape=jax.ShapeDtypeStruct((M, N), jnp.float32),
        grid_spec=pltpu.PrefetchScalarGridSpec(
            num_scalar_prefetch=0,
            grid=grid,
            in_specs=[pl.BlockSpec((tm, K), lambda i, j: (i, 0)),
                      pl.BlockSpec((K, tn), lambda i, j: (0, j)),
                      pl.BlockSpec((1, tn), lambda i, j: (0, j))],
            out_specs=pl.BlockSpec((tm, tn), lambda i, j: (i, j)),
        ),
        compiler_params=pltpu.CompilerParams(
            dimension_semantics=("parallel", "parallel")),
    )(x, w, b)


# ----------------------------------------------------------------------------
# Sequential LSTM recurrence kernel (time-blocked, state carried in VMEM).
# ----------------------------------------------------------------------------
def _lstm_kernel(xg_ref, h0_ref, c0_ref, whh0_ref, wcat_ref, bcat_ref,
                 htop_ref, hN_ref, cN_ref,
                 h_sc, c_sc,
                 *, num_layers, hidden_size, steps_per_block):
    H = hidden_size
    L = num_layers

    @pl.when(pl.program_id(0) == 0)
    def _():
        h_sc[...] = h0_ref[...].astype(jnp.float32)
        c_sc[...] = c0_ref[...].astype(jnp.float32)

    def _gate_update(gates, c_prev):
        # PyTorch LSTM gate order: i, f, g, o.  H is lane-aligned (multiple of 128)
        # so these slices land on lane-register boundaries.
        i = jax.nn.sigmoid(gates[:, 0 * H:1 * H])
        f = jax.nn.sigmoid(gates[:, 1 * H:2 * H])
        g = jnp.tanh(gates[:, 2 * H:3 * H])
        o = jax.nn.sigmoid(gates[:, 3 * H:4 * H])
        c_new = f * c_prev + i * g
        h_new = o * jnp.tanh(c_new)
        return h_new, c_new

    def step(t, carry):
        # Layer 0: the x-side contribution (x @ W_ih0 + b0) was precomputed outside the
        # recurrence; only the recurrent matmul remains on the serial critical path.
        gates = xg_ref[t] + jnp.dot(h_sc[0], whh0_ref[...],
                                    preferred_element_type=jnp.float32)
        h_new, c_new = _gate_update(gates, c_sc[0])
        h_sc[0] = h_new
        c_sc[0] = c_new
        inp = h_new
        # Upper layers: one fused [input, h_prev] @ W_cat matmul per layer (K = 2H).
        for l in range(1, L):
            cat = jnp.concatenate([inp, h_sc[l]], axis=-1)          # (B, 2H)
            gates = (jnp.dot(cat, wcat_ref[l - 1],
                             preferred_element_type=jnp.float32)
                     + bcat_ref[l - 1])
            h_new, c_new = _gate_update(gates, c_sc[l])
            h_sc[l] = h_new
            c_sc[l] = c_new
            inp = h_new
        htop_ref[t] = inp.astype(htop_ref.dtype)
        return carry

    lax.fori_loop(0, steps_per_block, step, 0, unroll=True)

    @pl.when(pl.program_id(0) == pl.num_programs(0) - 1)
    def _():
        hN_ref[...] = h_sc[...].astype(hN_ref.dtype)
        cN_ref[...] = c_sc[...].astype(cN_ref.dtype)


def lstm_recurrence(xg_tm, h0, c0, w_hh0, w_cat, b_cat, *, steps_pref=8):
    """xg_tm: (T, B, 4H) precomputed layer-0 gate partials (time-major).
    Returns (h_top (T,B,H), hN (L,B,H), cN (L,B,H))."""
    T, B, G = xg_tm.shape
    L, _, H = h0.shape
    assert G == 4 * H
    tt = min(T, steps_pref)                 # timesteps per grid iteration
    while T % tt:
        tt -= 1
    kernel = functools.partial(_lstm_kernel, num_layers=L, hidden_size=H,
                               steps_per_block=tt)
    return pl.pallas_call(
        kernel,
        out_shape=(jax.ShapeDtypeStruct((T, B, H), jnp.float32),
                   jax.ShapeDtypeStruct((L, B, H), jnp.float32),
                   jax.ShapeDtypeStruct((L, B, H), jnp.float32)),
        grid_spec=pltpu.PrefetchScalarGridSpec(
            num_scalar_prefetch=0,
            grid=(T // tt,),
            in_specs=[
                pl.BlockSpec((tt, B, G), lambda tb: (tb, 0, 0)),     # layer-0 gate partials
                pl.BlockSpec((L, B, H), lambda tb: (0, 0, 0)),       # h0
                pl.BlockSpec((L, B, H), lambda tb: (0, 0, 0)),       # c0
                pl.BlockSpec((H, G), lambda tb: (0, 0)),             # W_hh layer 0
                pl.BlockSpec(w_cat.shape, lambda tb: (0, 0, 0)),     # fused upper-layer weights
                pl.BlockSpec(b_cat.shape, lambda tb: (0, 0, 0)),     # upper-layer biases
            ],
            out_specs=[
                pl.BlockSpec((tt, B, H), lambda tb: (tb, 0, 0)),     # top-layer hidden states
                pl.BlockSpec((L, B, H), lambda tb: (0, 0, 0)),       # final h (written at last step)
                pl.BlockSpec((L, B, H), lambda tb: (0, 0, 0)),       # final c (written at last step)
            ],
            scratch_shapes=[pltpu.VMEM((L, B, H), jnp.float32),      # carried h
                            pltpu.VMEM((L, B, H), jnp.float32)],     # carried c
        ),
        compiler_params=pltpu.CompilerParams(
            dimension_semantics=("arbitrary",)),  # sequential recurrence: must stay arbitrary
    )(xg_tm, h0, c0, w_hh0, w_cat, b_cat)


# ----------------------------------------------------------------------------
# Full forward pass (Pallas equivalent of DecoderRNN.forward).
# ----------------------------------------------------------------------------
def decoder_forward(params, x_tokens, hc):
    h0, c0 = hc
    L, B, H = h0.shape
    Bx, T = x_tokens.shape
    assert Bx == B
    V, E = params["embed"].shape

    # Embedding gather (glue) with transposed indices -> time-major directly.
    x_tm = jnp.take(params["embed"], x_tokens.T, axis=0)             # (T, B, E)

    # Hoisted layer-0 input projection for all timesteps at once (parallel MXU matmul).
    xg_flat = matmul_bias(x_tm.reshape(T * B, E), params["w_ih0"], params["b0"])
    xg_tm = xg_flat.reshape(T, B, 4 * H)

    # Sequential recurrence (only recurrent matmuls on the critical path).
    h_top_tm, hN, cN = lstm_recurrence(xg_tm, h0, c0, params["w_hh0"],
                                       params["w_cat"], params["b_cat"])

    # Batch-first ordering of the *small* (T, B, H) output, then the big projection.
    h_bf = jnp.transpose(h_top_tm, (1, 0, 2)).reshape(B * T, H)
    out = matmul_bias(h_bf, params["w_lin"], params["b_lin"])        # (B*T, V)
    return out, (hN, cN)


# ----------------------------------------------------------------------------
# Pure-JAX reference (PyTorch LSTM semantics) and parameter construction.
# ----------------------------------------------------------------------------
def decoder_forward_ref(params, x_tokens, hc):
    h, c = hc
    B, T = x_tokens.shape
    L, _, H = h.shape
    emb = jnp.take(params["embed"], x_tokens, axis=0)                # (B, T, E)
    hs = [h[l] for l in range(L)]
    cs = [c[l] for l in range(L)]
    outs = []
    for t in range(T):
        inp = emb[:, t, :]
        for l in range(L):
            if l == 0:
                gates = (inp @ params["w_ih0"] + hs[0] @ params["w_hh0"]
                         + params["b0"][0])
            else:
                w = params["w_cat"][l - 1]
                gates = inp @ w[:H] + hs[l] @ w[H:] + params["b_cat"][l - 1][0]
            i = jax.nn.sigmoid(gates[:, 0 * H:1 * H])
            f = jax.nn.sigmoid(gates[:, 1 * H:2 * H])
            g = jnp.tanh(gates[:, 2 * H:3 * H])
            o = jax.nn.sigmoid(gates[:, 3 * H:4 * H])
            cs[l] = f * cs[l] + i * g
            hs[l] = o * jnp.tanh(cs[l])
            inp = hs[l]
        outs.append(inp)
    out_seq = jnp.stack(outs, axis=1).reshape(B * T, H)
    out = out_seq @ params["w_lin"] + params["b_lin"][0]
    return out, (jnp.stack(hs), jnp.stack(cs))


def init_params(key, vocab_size, embed_size, hidden_size, num_layers):
    """Deterministic synthetic parameters, stored pre-transposed / pre-fused:
       w_ih0 (E,4H), w_hh0 (H,4H), b0 (1,4H) for layer 0 (bias = b_ih + b_hh combined);
       w_cat (L-1, 2H, 4H) = [W_ih_l^T ; W_hh_l^T] and b_cat (L-1, 1, 4H) for upper layers;
       w_lin (H,V), b_lin (1,V).  (embed_size need NOT equal hidden_size.)"""
    H, E, V, L = hidden_size, embed_size, vocab_size, num_layers
    Lu = max(L - 1, 1)
    ks = jax.random.split(key, 8)
    s = 1.0 / (H ** 0.5)
    w_cat = jax.random.uniform(ks[3], (Lu, 2 * H, 4 * H), jnp.float32, -s, s)
    b_cat = jax.random.uniform(ks[4], (Lu, 1, 4 * H), jnp.float32, -s, s)
    if L == 1:                      # dummy (never read by the kernel when L == 1)
        w_cat = jnp.zeros_like(w_cat)
        b_cat = jnp.zeros_like(b_cat)
    return {
        "embed": jax.random.normal(ks[0], (V, E), jnp.float32),
        "w_ih0": jax.random.uniform(ks[1], (E, 4 * H), jnp.float32, -s, s),
        "w_hh0": jax.random.uniform(ks[2], (H, 4 * H), jnp.float32, -s, s),
        "b0": jax.random.uniform(ks[5], (1, 4 * H), jnp.float32, -s, s),
        "w_cat": w_cat,
        "b_cat": b_cat,
        "w_lin": jax.random.uniform(ks[6], (H, V), jnp.float32, -s, s),
        "b_lin": jax.random.uniform(ks[7], (1, V), jnp.float32, -s, s),
    }


if __name__ == "__main__":
    # Lane/sublane-friendly small shapes: B=8 sublanes, H/V multiples of 128.
    vocab_size, embed_size, hidden_size, num_layers = 256, 64, 128, 2
    B, T = 8, 16

    key = jax.random.PRNGKey(0)
    kp, kx, kh, kc = jax.random.split(key, 4)

    params = init_params(kp, vocab_size, embed_size, hidden_size, num_layers)
    x_tokens = jax.random.randint(kx, (B, T), 0, vocab_size, dtype=jnp.int32)
    h0 = jax.random.normal(kh, (num_layers, B, hidden_size), jnp.float32)
    c0 = jax.random.normal(kc, (num_layers, B, hidden_size), jnp.float32)

    out, (hN, cN) = decoder_forward(params, x_tokens, (h0, c0))
    jax.block_until_ready((out, hN, cN))

    out_r, (hN_r, cN_r) = decoder_forward_ref(params, x_tokens, (h0, c0))
    assert out.shape == (B * T, vocab_size)
    assert hN.shape == (num_layers, B, hidden_size)
    assert cN.shape == (num_layers, B, hidden_size)
    assert jnp.allclose(out, out_r, atol=2e-3, rtol=2e-3)
    assert jnp.allclose(hN, hN_r, atol=2e-3, rtol=2e-3)
    assert jnp.allclose(cN, cN_r, atol=2e-3, rtol=2e-3)

    print("KERNEL_OK")
</pallas_src>

<mosaic_0001>
module attributes {stable_mosaic.version = 11 : i64} {
  func.func @_matmul_bias_kernel(%arg0: i32, %arg1: i32, %arg2: memref<128x64xf32, #tpu.memory_space<vmem>>, %arg3: memref<64x512xf32, #tpu.memory_space<vmem>>, %arg4: memref<1x512xf32, #tpu.memory_space<vmem>>, %arg5: memref<128x512xf32, #tpu.memory_space<vmem>>) attributes {dimension_semantics = [#tpu.dimension_semantics<parallel>, #tpu.dimension_semantics<parallel>], iteration_bounds = array<i64: 1, 1>, scalar_prefetch = 0 : i64, scratch_operands = 0 : i64, tpu.core_type = #tpu.core_type<tc>, window_params = [{transform_indices = @transform_0, window_bounds = array<i64: 128, 64>}, {transform_indices = @transform_1, window_bounds = array<i64: 64, 512>}, {transform_indices = @transform_2, window_bounds = array<i64: 1, 512>}, {transform_indices = @transform_3, window_bounds = array<i64: 128, 512>}]} {
    %c0 = arith.constant 0 : index
    %c0_0 = arith.constant 0 : index
    %0 = vector.load %arg2[%c0, %c0_0] : memref<128x64xf32, #tpu.memory_space<vmem>>, vector<128x64xf32>
    %c0_1 = arith.constant 0 : index
    %c0_2 = arith.constant 0 : index
    %1 = vector.load %arg3[%c0_1, %c0_2] : memref<64x512xf32, #tpu.memory_space<vmem>>, vector<64x512xf32>
    %cst = arith.constant dense<0.000000e+00> : vector<128x512xf32>
    %2 = tpu.matmul %0, %1, %cst {dimension_numbers = #tpu.dot_dimension_numbers<[1], [0], [0], [1], [0, 0, 1, 1], [], []>} : vector<128x64xf32>, vector<64x512xf32>, vector<128x512xf32> -> vector<128x512xf32>
    %c0_3 = arith.constant 0 : index
    %c0_4 = arith.constant 0 : index
    %3 = vector.load %arg4[%c0_3, %c0_4] : memref<1x512xf32, #tpu.memory_space<vmem>>, vector<1x512xf32>
    %4 = vector.broadcast %3 : vector<1x512xf32> to vector<128x512xf32>
    %5 = arith.addf %2, %4 : vector<128x512xf32>
    %c0_5 = arith.constant 0 : index
    %c0_6 = arith.constant 0 : index
    %6 = vector.load %arg5[%c0_5, %c0_6] : memref<128x512xf32, #tpu.memory_space<vmem>>, vector<128x512xf32>
    tpu.vector_store %arg5[%c0_5, %c0_6], %5 {strides = array<i32>} : memref<128x512xf32, #tpu.memory_space<vmem>>, vector<128x512xf32>,
    return
  }
  func.func @transform_0(%arg0: i32, %arg1: i32) -> (i32, i32) {
    %c0_i32 = arith.constant 0 : i32
    %c0_i32_0 = arith.constant 0 : i32
    return %arg0, %c0_i32 : i32, i32
  }
  func.func @transform_1(%arg0: i32, %arg1: i32) -> (i32, i32) {
    %c0_i32 = arith.constant 0 : i32
    %c0_i32_0 = arith.constant 0 : i32
    return %c0_i32, %arg1 : i32, i32
  }
  func.func @transform_2(%arg0: i32, %arg1: i32) -> (i32, i32) {
    %c0_i32 = arith.constant 0 : i32
    %c0_i32_0 = arith.constant 0 : i32
    return %c0_i32, %arg1 : i32, i32
  }
  func.func @transform_3(%arg0: i32, %arg1: i32) -> (i32, i32) {
    %c0_i32 = arith.constant 0 : i32
    return %arg0, %arg1 : i32, i32
  }
}

</mosaic_0001>

<llo_original>
// kernel: tpu_custom_call.1
$region0: #{tpu_custom_call.1}
  #allocation0 [shape = 'u32[]', space=smem, size = 0x4, offset = 0x4, fixed_abs, tag = 'smem constant byte address 0x4 - core index']
  #allocation1 [shape = 'u32[72,128]{1,0:T(1,128)}', space=vmem, size = 0x9000, scoped, tag = 'internal scratch']
  %s0 = inlined_call_operand.vmem [shape: f32[128,64], index: 0, kind: input, shape index: {}]
  %s1 = inlined_call_operand.hbm [shape: f32[64,512], index: 1, kind: input, shape index: {}]
  %s2 = inlined_call_operand.vmem [shape: f32[1,512], index: 2, kind: input, shape index: {}]
  %s3 = inlined_call_operand.hbm [shape: f32[128,512], index: 3, kind: output, shape index: {}]
  %s4 = sld [smem:[#allocation0]]
  $region26: #{tpu_custom_call.1} parent=0
    _
  %s6 = ssub.s32 1, %s4
  %s7 = scalar_select 0, %s6, %s4
  $region1: #{tpu_custom_call.1} parent=0
    #allocation2 [shape = 'u8[131072]{0}', space=vmem, size = 0x20000, scoped, tag = 'input window, operand 1, single buffered']
    #allocation3 [shape = 's32[1]{0}', space=sflag, size = 0x4, scoped, tag = 'scoped memory for tpu_custom_call.1']
    #allocation4 [shape = 's32[1]{0}', space=sflag, size = 0x4, scoped, tag = 'scoped memory for tpu_custom_call.1']
    #allocation5 [shape = 'u8[262144]{0}', space=vmem, size = 0x40000, scoped, tag = 'output window, operand 0, single buffered']
    %8 = vsyncpa [#allocation3], 0
    %9 = vsyncpa [#allocation4], 0
    // Predicated region
    $region2: #{tpu_custom_call.1} parent=1 // pred_check
      _
    $region3: #{tpu_custom_call.1} parent=1 // pred_check_branch
      %11 = sbr.rel (0) target = $region5
    $region4: #{tpu_custom_call.1} parent=1 // pred_region
      _
    $region5: #{tpu_custom_call.1} parent=1 // pred_fallthru
      _
    // Predicated region
    $region6: #{tpu_custom_call.1} parent=1 // pred_check
      _
    $region7: #{tpu_custom_call.1} parent=1 // pred_check_branch
      %13 = sbr.rel (0) target = $region9
    $region8: #{tpu_custom_call.1} parent=1 // pred_region
      %15 = vsyncadd [#allocation3], 0
      %s16 = sshll.u32 %s1, 4
      %s17 = int_to_ptr.hbm [resolvable:$true] %s16
      %s18 = sshll.u32 [#allocation2], 4
      %s19 = int_to_ptr.vmem [resolvable:$true] %s18
      %24 = dma.hbm_to_vmem [thread:$0]  %s17, 4096, %s19, [#allocation3], 512, 512, 32
    $region9: #{tpu_custom_call.1} parent=1 // pred_fallthru
      _
    // Predicated region
    $region10: #{tpu_custom_call.1} parent=1 // pred_check
      _
    $region11: #{tpu_custom_call.1} parent=1 // pred_check_branch
      %26 = sbr.rel (0) target = $region13
    $region12: #{tpu_custom_call.1} parent=1 // pred_region
      _
    $region13: #{tpu_custom_call.1} parent=1 // pred_fallthru
      _
    // Predicated region
    $region14: #{tpu_custom_call.1} parent=1 // pred_check
      _
    $region15: #{tpu_custom_call.1} parent=1 // pred_check_branch
      %28 = sbr.rel (0) target = $region17
    $region16: #{tpu_custom_call.1} parent=1 // pred_region
      %30 = dma.done [#allocation3], 4096
    $region17: #{tpu_custom_call.1} parent=1 // pred_fallthru
      _
    %v31 = vld [vmem:[%s0] sm:$0xff]
    %v32 = vld [vmem:[%s0 + $0x8] sm:$0xff]
    %v33 = vld [vmem:[%s0 + $0x10] sm:$0xff]
    %v34 = vld [vmem:[%s0 + $0x18] sm:$0xff]
    %v35 = vld [vmem:[%s0 + $0x20] sm:$0xff]
    %v36 = vld [vmem:[%s0 + $0x28] sm:$0xff]
    %v37 = vld [vmem:[%s0 + $0x30] sm:$0xff]
    %v38 = vld [vmem:[%s0 + $0x38] sm:$0xff]
    %v39 = vld [vmem:[%s0 + $0x40] sm:$0xff]
    %v40 = vld [vmem:[%s0 + $0x48] sm:$0xff]
    %v41 = vld [vmem:[%s0 + $0x50] sm:$0xff]
    %v42 = vld [vmem:[%s0 + $0x58] sm:$0xff]
    %v43 = vld [vmem:[%s0 + $0x60] sm:$0xff]
    %v44 = vld [vmem:[%s0 + $0x68] sm:$0xff]
    %v45 = vld [vmem:[%s0 + $0x70] sm:$0xff]
    %v46 = vld [vmem:[%s0 + $0x78] sm:$0xff]
    %v47 = vld [vmem:[#allocation2] sm:$0xff]
    %v48 = vld [vmem:[#allocation2 + $0x8] sm:$0xff]
    %v49 = vld [vmem:[#allocation2 + $0x10] sm:$0xff]
    %v50 = vld [vmem:[#allocation2 + $0x18] sm:$0xff]
    %v51 = vld [vmem:[#allocation2 + $0x20] sm:$0xff]
    %v52 = vld [vmem:[#allocation2 + $0x28] sm:$0xff]
    %v53 = vld [vmem:[#allocation2 + $0x30] sm:$0xff]
    %v54 = vld [vmem:[#allocation2 + $0x38] sm:$0xff]
    %v55 = vld [vmem:[#allocation2 + $0x40] sm:$0xff]
    %v56 = vld [vmem:[#allocation2 + $0x48] sm:$0xff]
    %v57 = vld [vmem:[#allocation2 + $0x50] sm:$0xff]
    %v58 = vld [vmem:[#allocation2 + $0x58] sm:$0xff]
    %v59 = vld [vmem:[#allocation2 + $0x60] sm:$0xff]
    %v60 = vld [vmem:[#allocation2 + $0x68] sm:$0xff]
    %v61 = vld [vmem:[#allocation2 + $0x70] sm:$0xff]
    %v62 = vld [vmem:[#allocation2 + $0x78] sm:$0xff]
    %v63 = vld [vmem:[#allocation2 + $0x80] sm:$0xff]
    %v64 = vld [vmem:[#allocation2 + $0x88] sm:$0xff]
    %v65 = vld [vmem:[#allocation2 + $0x90] sm:$0xff]
    %v66 = vld [vmem:[#allocation2 + $0x98] sm:$0xff]
    %v67 = vld [vmem:[#allocation2 + $0xa0] sm:$0xff]
    %v68 = vld [vmem:[#allocation2 + $0xa8] sm:$0xff]
    %v69 = vld [vmem:[#allocation2 + $0xb0] sm:$0xff]
    %v70 = vld [vmem:[#allocation2 + $0xb8] sm:$0xff]
    %v71 = vld [vmem:[#allocation2 + $0xc0] sm:$0xff]
    %v72 = vld [vmem:[#allocation2 + $0xc8] sm:$0xff]
    %v73 = vld [vmem:[#allocation2 + $0xd0] sm:$0xff]
    %v74 = vld [vmem:[#allocation2 + $0xd8] sm:$0xff]
    %v75 = vld [vmem:[#allocation2 + $0xe0] sm:$0xff]
    %v76 = vld [vmem:[#allocation2 + $0xe8] sm:$0xff]
    %v77 = vld [vmem:[#allocation2 + $0xf0] sm:$0xff]
    %v78 = vld [vmem:[#allocation2 + $0xf8] sm:$0xff]
    %v79 = vld [vmem:[%s2] sm:$0xf]
    %v81 = vperm.slane %v79, 0
    %v82 = vperm.slane %v79, 1
    %v83 = vperm.slane %v79, 2
    %v84 = vperm.slane %v79, 3
    %vm89 = vcmask 523264
    %v91 = vsel %vm89, %v31, 0
    %v94 = vsel %vm89, %v32, 0
    %v97 = vsel %vm89, %v33, 0
    %v100 = vsel %vm89, %v34, 0
    %v103 = vsel %vm89, %v35, 0
    %v106 = vsel %vm89, %v36, 0
    %v109 = vsel %vm89, %v37, 0
    %v112 = vsel %vm89, %v38, 0
    %v115 = vsel %vm89, %v39, 0
    %v118 = vsel %vm89, %v40, 0
    %v121 = vsel %vm89, %v41, 0
    %v124 = vsel %vm89, %v42, 0
    %v127 = vsel %vm89, %v43, 0
    %v130 = vsel %vm89, %v44, 0
    %v133 = vsel %vm89, %v45, 0
    %v136 = vsel %vm89, %v46, 0
    %138 = vmatpush.msra.mxu0 0.0
    %139 = vmatpush.msra.mxu0 0.0
    %140 = vmatpush.msra.mxu0 0.0
    %141 = vmatpush.msra.mxu0 0.0
    %142 = vmatpush.msra.mxu0 0.0
    %143 = vmatpush.msra.mxu0 0.0
    %144 = vmatpush.msra.mxu0 0.0
    %145 = vmatpush.msra.mxu0 0.0
    %146 = vmatpush.msra.mxu0 %v75
    %147 = vmatpush.msra.mxu0 %v71
    %148 = vmatpush.msra.mxu0 %v67
    %149 = vmatpush.msra.mxu0 %v63
    %150 = vmatpush.msra.mxu0 %v59
    %151 = vmatpush.msra.mxu0 %v55
    %152 = vmatpush.msra.mxu0 %v51
    %153 = vmatpush.msra.mxu0 %v47
    %154 = vmatmul.f32.gmra.mxu0 %v91
    %v155 = vpop.f32.mrf.mxu0
    %v156 = vadd.f32 %v81, %v155
    %157 = vmatmul.f32.gmra.mxu0 %v94
    %v158 = vpop.f32.mrf.mxu0
    %v159 = vadd.f32 %v81, %v158
    %160 = vmatmul.f32.gmra.mxu0 %v97
    %v161 = vpop.f32.mrf.mxu0
    %v162 = vadd.f32 %v81, %v161
    %163 = vmatmul.f32.gmra.mxu0 %v100
    %v164 = vpop.f32.mrf.mxu0
    %v165 = vadd.f32 %v81, %v164
    %166 = vmatmul.f32.gmra.mxu0 %v103
    %v167 = vpop.f32.mrf.mxu0
    %v168 = vadd.f32 %v81, %v167
    %169 = vmatmul.f32.gmra.mxu0 %v106
    %v170 = vpop.f32.mrf.mxu0
    %v171 = vadd.f32 %v81, %v170
    %172 = vmatmul.f32.gmra.mxu0 %v109
    %v173 = vpop.f32.mrf.mxu0
    %v174 = vadd.f32 %v81, %v173
    %175 = vmatmul.f32.gmra.mxu0 %v112
    %v176 = vpop.f32.mrf.mxu0
    %v177 = vadd.f32 %v81, %v176
    %178 = vmatmul.f32.gmra.mxu0 %v115
    %v179 = vpop.f32.mrf.mxu0
    %v180 = vadd.f32 %v81, %v179
    %181 = vmatmul.f32.gmra.mxu0 %v118
    %v182 = vpop.f32.mrf.mxu0
    %v183 = vadd.f32 %v81, %v182
    %184 = vmatmul.f32.gmra.mxu0 %v121
    %v185 = vpop.f32.mrf.mxu0
    %v186 = vadd.f32 %v81, %v185
    %187 = vmatmul.f32.gmra.mxu0 %v124
    %v188 = vpop.f32.mrf.mxu0
    %v189 = vadd.f32 %v81, %v188
    %190 = vmatmul.f32.gmra.mxu0 %v127
    %v191 = vpop.f32.mrf.mxu0
    %v192 = vadd.f32 %v81, %v191
    %193 = vmatmul.f32.gmra.mxu0 %v130
    %v194 = vpop.f32.mrf.mxu0
    %v195 = vadd.f32 %v81, %v194
    %196 = vmatmul.f32.gmra.mxu0 %v133
    %v197 = vpop.f32.mrf.mxu0
    %v198 = vadd.f32 %v81, %v197
    %199 = vmatmul.f32.gmra.mxu0 %v136
    %v200 = vpop.f32.mrf.mxu0
    %v201 = vadd.f32 %v81, %v200
    %202 = vdwg.mxu0
    %203 = vmatpush.msra.mxu0 0.0
    %204 = vmatpush.msra.mxu0 0.0
    %205 = vmatpush.msra.mxu0 0.0
    %206 = vmatpush.msra.mxu0 0.0
    %207 = vmatpush.msra.mxu0 0.0
    %208 = vmatpush.msra.mxu0 0.0
    %209 = vmatpush.msra.mxu0 0.0
    %210 = vmatpush.msra.mxu0 0.0
    %211 = vmatpush.msra.mxu0 %v76
    %212 = vmatpush.msra.mxu0 %v72
    %213 = vmatpush.msra.mxu0 %v68
    %214 = vmatpush.msra.mxu0 %v64
    %215 = vmatpush.msra.mxu0 %v60
    %216 = vmatpush.msra.mxu0 %v56
    %217 = vmatpush.msra.mxu0 %v52
    %218 = vmatpush.msra.mxu0 %v48
    %219 = vmatmul.f32.gmra.mxu0 %v91
    %v220 = vpop.f32.mrf.mxu0
    %v221 = vadd.f32 %v82, %v220
    %222 = vmatmul.f32.gmra.mxu0 %v94
    %v223 = vpop.f32.mrf.mxu0
    %v224 = vadd.f32 %v82, %v223
    %225 = vmatmul.f32.gmra.mxu0 %v97
    %v226 = vpop.f32.mrf.mxu0
    %v227 = vadd.f32 %v82, %v226
    %228 = vmatmul.f32.gmra.mxu0 %v100
    %v229 = vpop.f32.mrf.mxu0
    %v230 = vadd.f32 %v82, %v229
    %231 = vmatmul.f32.gmra.mxu0 %v103
    %v232 = vpop.f32.mrf.mxu0
    %v233 = vadd.f32 %v82, %v232
    %234 = vmatmul.f32.gmra.mxu0 %v106
    %v235 = vpop.f32.mrf.mxu0
    %v236 = vadd.f32 %v82, %v235
    %237 = vmatmul.f32.gmra.mxu0 %v109
    %v238 = vpop.f32.mrf.mxu0
    %v239 = vadd.f32 %v82, %v238
    %240 = vmatmul.f32.gmra.mxu0 %v112
    %v241 = vpop.f32.mrf.mxu0
    %v242 = vadd.f32 %v82, %v241
    %243 = vmatmul.f32.gmra.mxu0 %v115
    %v244 = vpop.f32.mrf.mxu0
    %v245 = vadd.f32 %v82, %v244
    %246 = vmatmul.f32.gmra.mxu0 %v118
    %v247 = vpop.f32.mrf.mxu0
    %v248 = vadd.f32 %v82, %v247
    %249 = vmatmul.f32.gmra.mxu0 %v121
    %v250 = vpop.f32.mrf.mxu0
    %v251 = vadd.f32 %v82, %v250
    %252 = vmatmul.f32.gmra.mxu0 %v124
    %v253 = vpop.f32.mrf.mxu0
    %v254 = vadd.f32 %v82, %v253
    %255 = vmatmul.f32.gmra.mxu0 %v127
    %v256 = vpop.f32.mrf.mxu0
    %v257 = vadd.f32 %v82, %v256
    %258 = vmatmul.f32.gmra.mxu0 %v130
    %v259 = vpop.f32.mrf.mxu0
    %v260 = vadd.f32 %v82, %v259
    %261 = vmatmul.f32.gmra.mxu0 %v133
    %v262 = vpop.f32.mrf.mxu0
    %v263 = vadd.f32 %v82, %v262
    %264 = vmatmul.f32.gmra.mxu0 %v136
    %v265 = vpop.f32.mrf.mxu0
    %v266 = vadd.f32 %v82, %v265
    %267 = vdwg.mxu0
    %268 = vmatpush.msra.mxu0 0.0
    %269 = vmatpush.msra.mxu0 0.0
    %270 = vmatpush.msra.mxu0 0.0
    %271 = vmatpush.msra.mxu0 0.0
    %272 = vmatpush.msra.mxu0 0.0
    %273 = vmatpush.msra.mxu0 0.0
    %274 = vmatpush.msra.mxu0 0.0
    %275 = vmatpush.msra.mxu0 0.0
    %276 = vmatpush.msra.mxu0 %v77
    %277 = vmatpush.msra.mxu0 %v73
    %278 = vmatpush.msra.mxu0 %v69
    %279 = vmatpush.msra.mxu0 %v65
    %280 = vmatpush.msra.mxu0 %v61
    %281 = vmatpush.msra.mxu0 %v57
    %282 = vmatpush.msra.mxu0 %v53
    %283 = vmatpush.msra.mxu0 %v49
    %284 = vmatmul.f32.gmra.mxu0 %v91
    %v285 = vpop.f32.mrf.mxu0
    %v286 = vadd.f32 %v83, %v285
    %287 = vmatmul.f32.gmra.mxu0 %v94
    %v288 = vpop.f32.mrf.mxu0
    %v289 = vadd.f32 %v83, %v288
    %290 = vmatmul.f32.gmra.mxu0 %v97
    %v291 = vpop.f32.mrf.mxu0
    %v292 = vadd.f32 %v83, %v291
    %293 = vmatmul.f32.gmra.mxu0 %v100
    %v294 = vpop.f32.mrf.mxu0
    %v295 = vadd.f32 %v83, %v294
    %296 = vmatmul.f32.gmra.mxu0 %v103
    %v297 = vpop.f32.mrf.mxu0
    %v298 = vadd.f32 %v83, %v297
    %299 = vmatmul.f32.gmra.mxu0 %v106
    %v300 = vpop.f32.mrf.mxu0
    %v301 = vadd.f32 %v83, %v300
    %302 = vmatmul.f32.gmra.mxu0 %v109
    %v303 = vpop.f32.mrf.mxu0
    %v304 = vadd.f32 %v83, %v303
    %305 = vmatmul.f32.gmra.mxu0 %v112
    %v306 = vpop.f32.mrf.mxu0
    %v307 = vadd.f32 %v83, %v306
    %308 = vmatmul.f32.gmra.mxu0 %v115
    %v309 = vpop.f32.mrf.mxu0
    %v310 = vadd.f32 %v83, %v309
    %311 = vmatmul.f32.gmra.mxu0 %v118
    %v312 = vpop.f32.mrf.mxu0
    %v313 = vadd.f32 %v83, %v312
    %314 = vmatmul.f32.gmra.mxu0 %v121
    %v315 = vpop.f32.mrf.mxu0
    %v316 = vadd.f32 %v83, %v315
    %317 = vmatmul.f32.gmra.mxu0 %v124
    %v318 = vpop.f32.mrf.mxu0
    %v319 = vadd.f32 %v83, %v318
    %320 = vmatmul.f32.gmra.mxu0 %v127
    %v321 = vpop.f32.mrf.mxu0
    %v322 = vadd.f32 %v83, %v321
    %323 = vmatmul.f32.gmra.mxu0 %v130
    %v324 = vpop.f32.mrf.mxu0
    %v325 = vadd.f32 %v83, %v324
    %326 = vmatmul.f32.gmra.mxu0 %v133
    %v327 = vpop.f32.mrf.mxu0
    %v328 = vadd.f32 %v83, %v327
    %329 = vmatmul.f32.gmra.mxu0 %v136
    %v330 = vpop.f32.mrf.mxu0
    %v331 = vadd.f32 %v83, %v330
    %332 = vdwg.mxu0
    %333 = vmatpush.msra.mxu0 0.0
    %334 = vmatpush.msra.mxu0 0.0
    %335 = vmatpush.msra.mxu0 0.0
    %336 = vmatpush.msra.mxu0 0.0
    %337 = vmatpush.msra.mxu0 0.0
    %338 = vmatpush.msra.mxu0 0.0
    %339 = vmatpush.msra.mxu0 0.0
    %340 = vmatpush.msra.mxu0 0.0
    %341 = vmatpush.msra.mxu0 %v78
    %342 = vmatpush.msra.mxu0 %v74
    %343 = vmatpush.msra.mxu0 %v70
    %344 = vmatpush.msra.mxu0 %v66
    %345 = vmatpush.msra.mxu0 %v62
    %346 = vmatpush.msra.mxu0 %v58
    %347 = vmatpush.msra.mxu0 %v54
    %348 = vmatpush.msra.mxu0 %v50
    %349 = vmatmul.f32.gmra.mxu0 %v91
    %v350 = vpop.f32.mrf.mxu0
    %v351 = vadd.f32 %v84, %v350
    %352 = vmatmul.f32.gmra.mxu0 %v94
    %v353 = vpop.f32.mrf.mxu0
    %v354 = vadd.f32 %v84, %v353
    %355 = vmatmul.f32.gmra.mxu0 %v97
    %v356 = vpop.f32.mrf.mxu0
    %v357 = vadd.f32 %v84, %v356
    %358 = vmatmul.f32.gmra.mxu0 %v100
    %v359 = vpop.f32.mrf.mxu0
    %v360 = vadd.f32 %v84, %v359
    %361 = vmatmul.f32.gmra.mxu0 %v103
    %v362 = vpop.f32.mrf.mxu0
    %v363 = vadd.f32 %v84, %v362
    %364 = vmatmul.f32.gmra.mxu0 %v106
    %v365 = vpop.f32.mrf.mxu0
    %v366 = vadd.f32 %v84, %v365
    %367 = vmatmul.f32.gmra.mxu0 %v109
    %v368 = vpop.f32.mrf.mxu0
    %v369 = vadd.f32 %v84, %v368
    %370 = vmatmul.f32.gmra.mxu0 %v112
    %v371 = vpop.f32.mrf.mxu0
    %v372 = vadd.f32 %v84, %v371
    %373 = vmatmul.f32.gmra.mxu0 %v115
    %v374 = vpop.f32.mrf.mxu0
    %v375 = vadd.f32 %v84, %v374
    %376 = vmatmul.f32.gmra.mxu0 %v118
    %v377 = vpop.f32.mrf.mxu0
    %v378 = vadd.f32 %v84, %v377
    %379 = vmatmul.f32.gmra.mxu0 %v121
    %v380 = vpop.f32.mrf.mxu0
    %v381 = vadd.f32 %v84, %v380
    %382 = vmatmul.f32.gmra.mxu0 %v124
    %v383 = vpop.f32.mrf.mxu0
    %v384 = vadd.f32 %v84, %v383
    %385 = vmatmul.f32.gmra.mxu0 %v127
    %v386 = vpop.f32.mrf.mxu0
    %v387 = vadd.f32 %v84, %v386
    %388 = vmatmul.f32.gmra.mxu0 %v130
    %v389 = vpop.f32.mrf.mxu0
    %v390 = vadd.f32 %v84, %v389
    %391 = vmatmul.f32.gmra.mxu0 %v133
    %v392 = vpop.f32.mrf.mxu0
    %v393 = vadd.f32 %v84, %v392
    %394 = vmatmul.f32.gmra.mxu0 %v136
    %v395 = vpop.f32.mrf.mxu0
    %v396 = vadd.f32 %v84, %v395
    %397 = vdwg.mxu0
    %398 = vst [vmem:[#allocation5] sm:$0xff] %v156
    %399 = vst [vmem:[#allocation5 + $0x8] sm:$0xff] %v221
    %400 = vst [vmem:[#allocation5 + $0x10] sm:$0xff] %v286
    %401 = vst [vmem:[#allocation5 + $0x18] sm:$0xff] %v351
    %402 = vst [vmem:[#allocation5 + $0x20] sm:$0xff] %v159
    %403 = vst [vmem:[#allocation5 + $0x28] sm:$0xff] %v224
    %404 = vst [vmem:[#allocation5 + $0x30] sm:$0xff] %v289
    %405 = vst [vmem:[#allocation5 + $0x38] sm:$0xff] %v354
    %406 = vst [vmem:[#allocation5 + $0x40] sm:$0xff] %v162
    %407 = vst [vmem:[#allocation5 + $0x48] sm:$0xff] %v227
    %408 = vst [vmem:[#allocation5 + $0x50] sm:$0xff] %v292
    %409 = vst [vmem:[#allocation5 + $0x58] sm:$0xff] %v357
    %410 = vst [vmem:[#allocation5 + $0x60] sm:$0xff] %v165
    %411 = vst [vmem:[#allocation5 + $0x68] sm:$0xff] %v230
    %412 = vst [vmem:[#allocation5 + $0x70] sm:$0xff] %v295
    %413 = vst [vmem:[#allocation5 + $0x78] sm:$0xff] %v360
    %414 = vst [vmem:[#allocation5 + $0x80] sm:$0xff] %v168
    %415 = vst [vmem:[#allocation5 + $0x88] sm:$0xff] %v233
    %416 = vst [vmem:[#allocation5 + $0x90] sm:$0xff] %v298
    %417 = vst [vmem:[#allocation5 + $0x98] sm:$0xff] %v363
    %418 = vst [vmem:[#allocation5 + $0xa0] sm:$0xff] %v171
    %419 = vst [vmem:[#allocation5 + $0xa8] sm:$0xff] %v236
    %420 = vst [vmem:[#allocation5 + $0xb0] sm:$0xff] %v301
    %421 = vst [vmem:[#allocation5 + $0xb8] sm:$0xff] %v366
    %422 = vst [vmem:[#allocation5 + $0xc0] sm:$0xff] %v174
    %423 = vst [vmem:[#allocation5 + $0xc8] sm:$0xff] %v239
    %424 = vst [vmem:[#allocation5 + $0xd0] sm:$0xff] %v304
    %425 = vst [vmem:[#allocation5 + $0xd8] sm:$0xff] %v369
    %426 = vst [vmem:[#allocation5 + $0xe0] sm:$0xff] %v177
    %427 = vst [vmem:[#allocation5 + $0xe8] sm:$0xff] %v242
    %428 = vst [vmem:[#allocation5 + $0xf0] sm:$0xff] %v307
    %429 = vst [vmem:[#allocation5 + $0xf8] sm:$0xff] %v372
    %430 = vst [vmem:[#allocation5 + $0x100] sm:$0xff] %v180
    %431 = vst [vmem:[#allocation5 + $0x108] sm:$0xff] %v245
    %432 = vst [vmem:[#allocation5 + $0x110] sm:$0xff] %v310
    %433 = vst [vmem:[#allocation5 + $0x118] sm:$0xff] %v375
    %434 = vst [vmem:[#allocation5 + $0x120] sm:$0xff] %v183
    %435 = vst [vmem:[#allocation5 + $0x128] sm:$0xff] %v248
    %436 = vst [vmem:[#allocation5 + $0x130] sm:$0xff] %v313
    %437 = vst [vmem:[#allocation5 + $0x138] sm:$0xff] %v378
    %438 = vst [vmem:[#allocation5 + $0x140] sm:$0xff] %v186
    %439 = vst [vmem:[#allocation5 + $0x148] sm:$0xff] %v251
    %440 = vst [vmem:[#allocation5 + $0x150] sm:$0xff] %v316
    %441 = vst [vmem:[#allocation5 + $0x158] sm:$0xff] %v381
    %442 = vst [vmem:[#allocation5 + $0x160] sm:$0xff] %v189
    %443 = vst [vmem:[#allocation5 + $0x168] sm:$0xff] %v254
    %444 = vst [vmem:[#allocation5 + $0x170] sm:$0xff] %v319
    %445 = vst [vmem:[#allocation5 + $0x178] sm:$0xff] %v384
    %446 = vst [vmem:[#allocation5 + $0x180] sm:$0xff] %v192
    %447 = vst [vmem:[#allocation5 + $0x188] sm:$0xff] %v257
    %448 = vst [vmem:[#allocation5 + $0x190] sm:$0xff] %v322
    %449 = vst [vmem:[#allocation5 + $0x198] sm:$0xff] %v387
    %450 = vst [vmem:[#allocation5 + $0x1a0] sm:$0xff] %v195
    %451 = vst [vmem:[#allocation5 + $0x1a8] sm:$0xff] %v260
    %452 = vst [vmem:[#allocation5 + $0x1b0] sm:$0xff] %v325
    %453 = vst [vmem:[#allocation5 + $0x1b8] sm:$0xff] %v390
    %454 = vst [vmem:[#allocation5 + $0x1c0] sm:$0xff] %v198
    %455 = vst [vmem:[#allocation5 + $0x1c8] sm:$0xff] %v263
    %456 = vst [vmem:[#allocation5 + $0x1d0] sm:$0xff] %v328
    %457 = vst [vmem:[#allocation5 + $0x1d8] sm:$0xff] %v393
    %458 = vst [vmem:[#allocation5 + $0x1e0] sm:$0xff] %v201
    %459 = vst [vmem:[#allocation5 + $0x1e8] sm:$0xff] %v266
    %460 = vst [vmem:[#allocation5 + $0x1f0] sm:$0xff] %v331
    %461 = vst [vmem:[#allocation5 + $0x1f8] sm:$0xff] %v396
    // Predicated region
    $region18: #{tpu_custom_call.1} parent=1 // pred_check
      _
    $region19: #{tpu_custom_call.1} parent=1 // pred_check_branch
      %463 = sbr.rel (0) target = $region21
    $region20: #{tpu_custom_call.1} parent=1 // pred_region
      %465 = vsyncadd [#allocation4], 0
      %s466 = sshll.u32 [#allocation5], 4
      %s467 = int_to_ptr.vmem [resolvable:$true] %s466
      %s468 = sshll.u32 %s3, 4
      %s469 = int_to_ptr.hbm [resolvable:$true] %s468
      %474 = dma.vmem_to_hbm [thread:$0]  %s467, 8192, %s469, [#allocation4], 512, 512, 32
    $region21: #{tpu_custom_call.1} parent=1 // pred_fallthru
      _
    // Predicated region
    $region22: #{tpu_custom_call.1} parent=1 // pred_check
      _
    $region23: #{tpu_custom_call.1} parent=1 // pred_check_branch
      %476 = sbr.rel (0) target = $region25
    $region24: #{tpu_custom_call.1} parent=1 // pred_region
      %478 = dma.done [#allocation4], 8192
    $region25: #{tpu_custom_call.1} parent=1 // pred_fallthru
      _
    %479 = vsyncpa [#allocation3], 1
    %480 = vsyncpa [#allocation4], 1

</llo_original>
